<compile_context>
chip_gen: v5e
topology: v5e:2x2
jax: 0.10.0
libtpu: 0.0.40
codegen_flags: <defaults>
</compile_context>

<pallas_src>
import math

import jax
import jax.numpy as jnp
from jax.experimental import pallas as pl
from jax.experimental.pallas import tpu as pltpu

_MiB = 1024 * 1024
# Working-set target chosen to fit comfortably inside v7x's 64 MiB physical
# VMEM (v5e / v6e have 128 MiB); the cap leaves headroom for compiler scratch.
_VMEM_BUDGET = 40 * _MiB
_VMEM_LIMIT_CAP = 56 * _MiB


def _adapter_kernel(x_ref, wd_ref, bd_ref, wu_ref, bu_ref, scale_ref, o_ref):
    # down projection (MXU, f32 accumulate) + bias + ReLU (VPU, f32 epilogue —
    # required on v5e which has no bf16 VALU).
    h = jnp.dot(x_ref[...], wd_ref[...], preferred_element_type=jnp.float32)
    h = jnp.maximum(h + bd_ref[...], 0.0)
    # (dropout: identity in eval mode)
    # up projection + bias + scalar scale.
    y = jnp.dot(h.astype(wu_ref.dtype), wu_ref[...],
                preferred_element_type=jnp.float32)
    y = (y + bu_ref[...]) * scale_ref[0]
    o_ref[...] = y.astype(o_ref.dtype)


def mlp_adapter_forward(x, w_down, b_down, w_up, b_up, scale, *, tm=512,
                        pad_adapter=True, compute_dtype=None):
    """Fused eval-mode MLPAdapter forward.

    x: [..., hidden]; w_down: [hidden, adapter] (transposed vs PyTorch's
    [out, in]); w_up: [adapter, hidden]; biases 1-D; scale: (1,).

    compute_dtype: optionally cast x / weights (e.g. jnp.bfloat16) before the
    MXU dots on v6e/v7x (accumulation stays f32).  Default None keeps the
    input dtype so results match an f32 reference.

    Note: `hidden` should ideally be a multiple of 128 (lane-dense stores);
    other sizes are correct but use masked partial stores.
    """
    orig_shape = x.shape
    hidden = orig_shape[-1]
    adapter = w_down.shape[1]
    out_dtype = x.dtype

    if compute_dtype is not None:
        x = x.astype(compute_dtype)
        w_down = w_down.astype(compute_dtype)
        w_up = w_up.astype(compute_dtype)

    x2d = x.reshape(-1, hidden)
    M = x2d.shape[0]

    # Zero-pad the adapter (lane / MXU) dim up to a multiple of 128.  Exact:
    # padded h columns are relu(0 + 0) = 0 and the matching W_up rows are
    # zero, so they contribute nothing; weights are tiny so the extra HBM
    # traffic is negligible, and vregs/MXU lanes stop being mostly empty.
    if pad_adapter and adapter % 128 != 0:
        pad = 128 * pl.cdiv(adapter, 128) - adapter
        w_down = jnp.pad(w_down, ((0, 0), (0, pad)))
        b_down = jnp.pad(b_down, ((0, pad),))
        w_up = jnp.pad(w_up, ((0, pad), (0, 0)))
        adapter += pad

    x_bytes = jnp.dtype(x.dtype).itemsize
    w_bytes = jnp.dtype(w_down.dtype).itemsize
    o_bytes = jnp.dtype(out_dtype).itemsize

    def vmem_bytes(tm_, weight_bufs):
        io = 2 * tm_ * hidden * (x_bytes + o_bytes)           # x + out, 2-deep
        weights = weight_bufs * (2 * hidden * adapter * w_bytes
                                 + (adapter + hidden) * w_bytes)
        scratch = tm_ * (adapter + hidden) * 4                # f32 intermediates
        return io + weights + scratch

    # --- row-tile selection -------------------------------------------------
    tm = max(1, min(tm, M))
    if tm < M:
        tm = max(8, (tm // 8) * 8)                            # sublane multiple
    # Shrink until the working set fits the VMEM budget (conservatively
    # assuming double-buffered weights, i.e. the fallback path).
    while tm > 8 and vmem_bytes(tm, 2) > _VMEM_BUDGET:
        tm = max(8, ((tm // 2) // 8) * 8)
    # v7x has 2 TensorCores/chip: keep >= 2 grid steps so the 'parallel'
    # M axis can be sharded across them (harmless on v5e/v6e).
    if M >= 16 and pl.cdiv(M, tm) < 2:
        tm = min(tm, ((pl.cdiv(M, 2) + 7) // 8) * 8)

    grid = (pl.cdiv(M, tm),)

    # Biases as (1, dim) 2-D VMEM tiles so they broadcast over the row tile.
    b_down2d = b_down.reshape(1, adapter)
    b_up2d = b_up.reshape(1, hidden)

    cost = pl.CostEstimate(
        flops=4 * M * hidden * adapter,
        transcendentals=0,
        bytes_accessed=(M * hidden * (x_bytes + o_bytes)
                        + 2 * hidden * adapter * w_bytes
                        + (adapter + hidden) * w_bytes))

    def build(single_buffer_weights):
        if single_buffer_weights:
            # Constant-index operands: no need for double buffering.
            const_kw = dict(pipeline_mode=pl.Buffered(1))
            weight_bufs = 1
        else:
            const_kw = {}
            weight_bufs = 2
        vmem_limit = int(min(max(1.3 * vmem_bytes(tm, weight_bufs), 32 * _MiB),
                             _VMEM_LIMIT_CAP))
        return pl.pallas_call(
            _adapter_kernel,
            out_shape=jax.ShapeDtypeStruct((M, hidden), out_dtype),
            grid_spec=pltpu.PrefetchScalarGridSpec(
                num_scalar_prefetch=0,
                grid=grid,
                in_specs=[
                    pl.BlockSpec((tm, hidden), lambda i: (i, 0)),        # x rows
                    pl.BlockSpec((hidden, adapter), lambda i: (0, 0), **const_kw),
                    pl.BlockSpec((1, adapter), lambda i: (0, 0), **const_kw),
                    pl.BlockSpec((adapter, hidden), lambda i: (0, 0), **const_kw),
                    pl.BlockSpec((1, hidden), lambda i: (0, 0), **const_kw),
                    pl.BlockSpec(memory_space=pltpu.SMEM),               # scale (1,)
                ],
                out_specs=pl.BlockSpec((tm, hidden), lambda i: (i, 0)),
            ),
            compiler_params=pltpu.CompilerParams(
                dimension_semantics=("parallel",),
                vmem_limit_bytes=vmem_limit),
            cost_estimate=cost,
        )

    args = (x2d, w_down, b_down2d, w_up, b_up2d, scale)
    try:
        # Weights/biases never change across the grid — single-buffer them to
        # halve their VMEM footprint (keeps tm large on v7x's 64 MiB VMEM).
        out2d = build(single_buffer_weights=True)(*args)
    except Exception:
        # pipeline_mode not supported by this jax version — default buffering.
        out2d = build(single_buffer_weights=False)(*args)

    return out2d.reshape(orig_shape)


def init_params(key, hidden_size, adapter_dim, dtype=jnp.float32):
    """Matches nn.init.kaiming_uniform_(w, a=sqrt(5)) + zero biases.
    PyTorch linear weight is [out, in]; we store transposed [in, out]."""
    k1, k2 = jax.random.split(key)
    # kaiming_uniform with a=sqrt(5): bound = 1/sqrt(fan_in)
    bound_down = 1.0 / math.sqrt(hidden_size)
    bound_up = 1.0 / math.sqrt(adapter_dim)
    w_down = jax.random.uniform(k1, (hidden_size, adapter_dim), dtype,
                                minval=-bound_down, maxval=bound_down)
    w_up = jax.random.uniform(k2, (adapter_dim, hidden_size), dtype,
                              minval=-bound_up, maxval=bound_up)
    b_down = jnp.zeros((adapter_dim,), dtype)
    b_up = jnp.zeros((hidden_size,), dtype)
    scale = jnp.ones((1,), dtype)                 # torch.ones(1) parameter
    return w_down, b_down, w_up, b_up, scale


def reference_forward(x, w_down, b_down, w_up, b_up, scale):
    h = jnp.maximum(x @ w_down + b_down, 0.0)
    return (h @ w_up + b_up) * scale[0]


if __name__ == "__main__":
    batch, seq, hidden, adapter = 2, 8, 32, 16

    key = jax.random.PRNGKey(0)
    kx, kp = jax.random.split(key)
    x = jax.random.normal(kx, (batch, seq, hidden), jnp.float32)
    params = init_params(kp, hidden, adapter)

    out = jax.block_until_ready(mlp_adapter_forward(x, *params))

    ref = reference_forward(x, *params)
    assert out.shape == x.shape
    assert jnp.allclose(out, ref, atol=1e-5, rtol=1e-5), "mismatch vs reference"

    print("KERNEL_OK")
</pallas_src>

<mosaic_0001>
module attributes {stable_mosaic.version = 11 : i64} {
  func.func @_adapter_kernel(%arg0: i32, %arg1: memref<8x32xf32, #tpu.memory_space<vmem>>, %arg2: memref<32x128xf32, #tpu.memory_space<vmem>>, %arg3: memref<1x128xf32, #tpu.memory_space<vmem>>, %arg4: memref<128x32xf32, #tpu.memory_space<vmem>>, %arg5: memref<1x32xf32, #tpu.memory_space<vmem>>, %arg6: memref<1xf32, #tpu.memory_space<smem>>, %arg7: memref<8x32xf32, #tpu.memory_space<vmem>>) attributes {dimension_semantics = [#tpu.dimension_semantics<parallel>], iteration_bounds = array<i64: 2>, scalar_prefetch = 0 : i64, scratch_operands = 0 : i64, tpu.core_type = #tpu.core_type<tc>, window_params = [{transform_indices = @transform_0, window_bounds = array<i64: 8, 32>}, {pipeline_mode = #tpu.pipeline_mode<synchronous>, transform_indices = @transform_1, window_bounds = array<i64: 32, 128>}, {pipeline_mode = #tpu.pipeline_mode<synchronous>, transform_indices = @transform_2, window_bounds = array<i64: 1, 128>}, {pipeline_mode = #tpu.pipeline_mode<synchronous>, transform_indices = @transform_3, window_bounds = array<i64: 128, 32>}, {pipeline_mode = #tpu.pipeline_mode<synchronous>, transform_indices = @transform_4, window_bounds = array<i64: 1, 32>}, {transform_indices = @transform_5, window_bounds = array<i64: 1>}, {transform_indices = @transform_6, window_bounds = array<i64: 8, 32>}]} {
    %c0 = arith.constant 0 : index
    %c0_0 = arith.constant 0 : index
    %0 = vector.load %arg1[%c0, %c0_0] : memref<8x32xf32, #tpu.memory_space<vmem>>, vector<8x32xf32>
    %c0_1 = arith.constant 0 : index
    %c0_2 = arith.constant 0 : index
    %1 = vector.load %arg2[%c0_1, %c0_2] : memref<32x128xf32, #tpu.memory_space<vmem>>, vector<32x128xf32>
    %cst = arith.constant dense<0.000000e+00> : vector<8x128xf32>
    %2 = tpu.matmul %0, %1, %cst {dimension_numbers = #tpu.dot_dimension_numbers<[1], [0], [0], [1], [0, 0, 1, 1], [], []>} : vector<8x32xf32>, vector<32x128xf32>, vector<8x128xf32> -> vector<8x128xf32>
    %c0_3 = arith.constant 0 : index
    %c0_4 = arith.constant 0 : index
    %3 = vector.load %arg3[%c0_3, %c0_4] : memref<1x128xf32, #tpu.memory_space<vmem>>, vector<1x128xf32>
    %4 = vector.broadcast %3 : vector<1x128xf32> to vector<8x128xf32>
    %5 = arith.addf %2, %4 : vector<8x128xf32>
    %cst_5 = arith.constant 0.000000e+00 : f32
    %6 = vector.broadcast %cst_5 : f32 to vector<8x128xf32>
    %7 = arith.maximumf %5, %6 : vector<8x128xf32>
    %c0_6 = arith.constant 0 : index
    %c0_7 = arith.constant 0 : index
    %8 = vector.load %arg4[%c0_6, %c0_7] : memref<128x32xf32, #tpu.memory_space<vmem>>, vector<128x32xf32>
    %cst_8 = arith.constant dense<0.000000e+00> : vector<8x32xf32>
    %9 = tpu.matmul %7, %8, %cst_8 {dimension_numbers = #tpu.dot_dimension_numbers<[1], [0], [0], [1], [0, 0, 1, 1], [], []>} : vector<8x128xf32>, vector<128x32xf32>, vector<8x32xf32> -> vector<8x32xf32>
    %c0_9 = arith.constant 0 : index
    %c0_10 = arith.constant 0 : index
    %10 = vector.load %arg5[%c0_9, %c0_10] : memref<1x32xf32, #tpu.memory_space<vmem>>, vector<1x32xf32>
    %11 = vector.broadcast %10 : vector<1x32xf32> to vector<8x32xf32>
    %12 = arith.addf %9, %11 : vector<8x32xf32>
    %c0_11 = arith.constant 0 : index
    %13 = memref.load %arg6[%c0_11] : memref<1xf32, #tpu.memory_space<smem>>
    %14 = vector.broadcast %13 : f32 to vector<8x32xf32>
    %15 = arith.mulf %12, %14 : vector<8x32xf32>
    %c0_12 = arith.constant 0 : index
    %c0_13 = arith.constant 0 : index
    %16 = vector.load %arg7[%c0_12, %c0_13] : memref<8x32xf32, #tpu.memory_space<vmem>>, vector<8x32xf32>
    tpu.vector_store %arg7[%c0_12, %c0_13], %15 {strides = array<i32>} : memref<8x32xf32, #tpu.memory_space<vmem>>, vector<8x32xf32>,
    return
  }
  func.func @transform_0(%arg0: i32) -> (i32, i32) {
    %c0_i32 = arith.constant 0 : i32
    %c0_i32_0 = arith.constant 0 : i32
    return %arg0, %c0_i32 : i32, i32
  }
  func.func @transform_1(%arg0: i32) -> (i32, i32) {
    %c0_i32 = arith.constant 0 : i32
    %c0_i32_0 = arith.constant 0 : i32
    %c0_i32_1 = arith.constant 0 : i32
    return %c0_i32, %c0_i32_0 : i32, i32
  }
  func.func @transform_2(%arg0: i32) -> (i32, i32) {
    %c0_i32 = arith.constant 0 : i32
    %c0_i32_0 = arith.constant 0 : i32
    %c0_i32_1 = arith.constant 0 : i32
    return %c0_i32, %c0_i32_0 : i32, i32
  }
  func.func @transform_3(%arg0: i32) -> (i32, i32) {
    %c0_i32 = arith.constant 0 : i32
    %c0_i32_0 = arith.constant 0 : i32
    %c0_i32_1 = arith.constant 0 : i32
    return %c0_i32, %c0_i32_0 : i32, i32
  }
  func.func @transform_4(%arg0: i32) -> (i32, i32) {
    %c0_i32 = arith.constant 0 : i32
    %c0_i32_0 = arith.constant 0 : i32
    %c0_i32_1 = arith.constant 0 : i32
    return %c0_i32, %c0_i32_0 : i32, i32
  }
  func.func @transform_5(%arg0: i32) -> i32 {
    %c0_i32 = arith.constant 0 : i32
    %c0_i32_0 = arith.constant 0 : i32
    return %c0_i32 : i32
  }
  func.func @transform_6(%arg0: i32) -> (i32, i32) {
    %c0_i32 = arith.constant 0 : i32
    %c0_i32_0 = arith.constant 0 : i32
    return %arg0, %c0_i32 : i32, i32
  }
}

module attributes {stable_mosaic.version = 11 : i64} {
  func.func @_adapter_kernel(%arg0: i32, %arg1: memref<8x32xf32, #tpu.memory_space<vmem>>, %arg2: memref<32x128xf32, #tpu.memory_space<vmem>>, %arg3: memref<1x128xf32, #tpu.memory_space<vmem>>, %arg4: memref<128x32xf32, #tpu.memory_space<vmem>>, %arg5: memref<1x32xf32, #tpu.memory_space<vmem>>, %arg6: memref<1xf32, #tpu.memory_space<smem>>, %arg7: memref<8x32xf32, #tpu.memory_space<vmem>>) attributes {dimension_semantics = [#tpu.dimension_semantics<parallel>], iteration_bounds = array<i64: 2>, scalar_prefetch = 0 : i64, scratch_operands = 0 : i64, tpu.core_type = #tpu.core_type<tc>, window_params = [{transform_indices = @transform_0, window_bounds = array<i64: 8, 32>}, {pipeline_mode = #tpu.pipeline_mode<synchronous>, transform_indices = @transform_1, window_bounds = array<i64: 32, 128>}, {pipeline_mode = #tpu.pipeline_mode<synchronous>, transform_indices = @transform_2, window_bounds = array<i64: 1, 128>}, {pipeline_mode = #tpu.pipeline_mode<synchronous>, transform_indices = @transform_3, window_bounds = array<i64: 128, 32>}, {pipeline_mode = #tpu.pipeline_mode<synchronous>, transform_indices = @transform_4, window_bounds = array<i64: 1, 32>}, {transform_indices = @transform_5, window_bounds = array<i64: 1>}, {transform_indices = @transform_6, window_bounds = array<i64: 8, 32>}]} {
    %c0 = arith.constant 0 : index
    %c0_0 = arith.constant 0 : index
    %0 = vector.load %arg1[%c0, %c0_0] : memref<8x32xf32, #tpu.memory_space<vmem>>, vector<8x32xf32>
    %c0_1 = arith.constant 0 : index
    %c0_2 = arith.constant 0 : index
    %1 = vector.load %arg2[%c0_1, %c0_2] : memref<32x128xf32, #tpu.memory_space<vmem>>, vector<32x128xf32>
    %cst = arith.constant dense<0.000000e+00> : vector<8x128xf32>
    %2 = tpu.matmul %0, %1, %cst {dimension_numbers = #tpu.dot_dimension_numbers<[1], [0], [0], [1], [0, 0, 1, 1], [], []>} : vector<8x32xf32>, vector<32x128xf32>, vector<8x128xf32> -> vector<8x128xf32>
    %c0_3 = arith.constant 0 : index
    %c0_4 = arith.constant 0 : index
    %3 = vector.load %arg3[%c0_3, %c0_4] : memref<1x128xf32, #tpu.memory_space<vmem>>, vector<1x128xf32>
    %4 = vector.broadcast %3 : vector<1x128xf32> to vector<8x128xf32>
    %5 = arith.addf %2, %4 : vector<8x128xf32>
    %cst_5 = arith.constant 0.000000e+00 : f32
    %6 = vector.broadcast %cst_5 : f32 to vector<8x128xf32>
    %7 = arith.maximumf %5, %6 : vector<8x128xf32>
    %c0_6 = arith.constant 0 : index
    %c0_7 = arith.constant 0 : index
    %8 = vector.load %arg4[%c0_6, %c0_7] : memref<128x32xf32, #tpu.memory_space<vmem>>, vector<128x32xf32>
    %cst_8 = arith.constant dense<0.000000e+00> : vector<8x32xf32>
    %9 = tpu.matmul %7, %8, %cst_8 {dimension_numbers = #tpu.dot_dimension_numbers<[1], [0], [0], [1], [0, 0, 1, 1], [], []>} : vector<8x128xf32>, vector<128x32xf32>, vector<8x32xf32> -> vector<8x32xf32>
    %c0_9 = arith.constant 0 : index
    %c0_10 = arith.constant 0 : index
    %10 = vector.load %arg5[%c0_9, %c0_10] : memref<1x32xf32, #tpu.memory_space<vmem>>, vector<1x32xf32>
    %11 = vector.broadcast %10 : vector<1x32xf32> to vector<8x32xf32>
    %12 = arith.addf %9, %11 : vector<8x32xf32>
    %c0_11 = arith.constant 0 : index
    %13 = memref.load %arg6[%c0_11] : memref<1xf32, #tpu.memory_space<smem>>
    %14 = vector.broadcast %13 : f32 to vector<8x32xf32>
    %15 = arith.mulf %12, %14 : vector<8x32xf32>
    %c0_12 = arith.constant 0 : index
    %c0_13 = arith.constant 0 : index
    %16 = vector.load %arg7[%c0_12, %c0_13] : memref<8x32xf32, #tpu.memory_space<vmem>>, vector<8x32xf32>
    tpu.vector_store %arg7[%c0_12, %c0_13], %15 {strides = array<i32>} : memref<8x32xf32, #tpu.memory_space<vmem>>, vector<8x32xf32>,
    return
  }
  func.func @transform_0(%arg0: i32) -> (i32, i32) {
    %c0_i32 = arith.constant 0 : i32
    %c0_i32_0 = arith.constant 0 : i32
    return %arg0, %c0_i32 : i32, i32
  }
  func.func @transform_1(%arg0: i32) -> (i32, i32) {
    %c0_i32 = arith.constant 0 : i32
    %c0_i32_0 = arith.constant 0 : i32
    %c0_i32_1 = arith.constant 0 : i32
    return %c0_i32, %c0_i32_0 : i32, i32
  }
  func.func @transform_2(%arg0: i32) -> (i32, i32) {
    %c0_i32 = arith.constant 0 : i32
    %c0_i32_0 = arith.constant 0 : i32
    %c0_i32_1 = arith.constant 0 : i32
    return %c0_i32, %c0_i32_0 : i32, i32
  }
  func.func @transform_3(%arg0: i32) -> (i32, i32) {
    %c0_i32 = arith.constant 0 : i32
    %c0_i32_0 = arith.constant 0 : i32
    %c0_i32_1 = arith.constant 0 : i32
    return %c0_i32, %c0_i32_0 : i32, i32
  }
  func.func @transform_4(%arg0: i32) -> (i32, i32) {
    %c0_i32 = arith.constant 0 : i32
    %c0_i32_0 = arith.constant 0 : i32
    %c0_i32_1 = arith.constant 0 : i32
    return %c0_i32, %c0_i32_0 : i32, i32
  }
  func.func @transform_5(%arg0: i32) -> i32 {
    %c0_i32 = arith.constant 0 : i32
    %c0_i32_0 = arith.constant 0 : i32
    return %c0_i32 : i32
  }
  func.func @transform_6(%arg0: i32) -> (i32, i32) {
    %c0_i32 = arith.constant 0 : i32
    %c0_i32_0 = arith.constant 0 : i32
    return %arg0, %c0_i32 : i32, i32
  }
}

</mosaic_0001>

<llo_original>
// kernel: tpu_custom_call.1
$region0: #{tpu_custom_call.1}
  #allocation0 [shape = 'u32[]', space=smem, size = 0x4, offset = 0x4, fixed_abs, tag = 'smem constant byte address 0x4 - core index']
  #allocation1 [shape = 'u32[72,128]{1,0:T(1,128)}', space=vmem, size = 0x9000, scoped, tag = 'internal scratch']
  #allocation2 [shape = 'f32[1]{0:T(128)S(6)}', space=smem, size = 0x200, scoped, tag = 'scoped memory for tpu_custom_call.1']
  %s0 = inlined_call_operand.vmem [shape: f32[16,32], index: 0, kind: input, shape index: {}]
  %s1 = inlined_call_operand.vmem [shape: f32[32,128], index: 1, kind: input, shape index: {}]
  %s2 = inlined_call_operand.vmem [shape: f32[1,128], index: 2, kind: input, shape index: {}]
  %s3 = inlined_call_operand.vmem [shape: f32[128,32], index: 3, kind: input, shape index: {}]
  %s4 = inlined_call_operand.vmem [shape: f32[1,32], index: 4, kind: input, shape index: {}]
  %s5 = inlined_call_operand.<no memory space> [shape: f32[1], index: 5, kind: input, shape index: {}]
  %s6 = inlined_call_operand.hbm [shape: f32[16,32], index: 6, kind: output, shape index: {}]
  %s7 = sld [smem:[#allocation0]]
  $region57: #{tpu_custom_call.1} parent=0
    _
  %s9 = ssub.s32 1, %s7
  %s10 = scalar_select 0, %s9, %s7
  %11 = sst [smem:[#allocation2]] %s5
  $region1: #{tpu_custom_call.1} parent=0
    #allocation3 [shape = 'u8[8192]{0}', space=vmem, size = 0x2000, scoped, tag = 'output window, operand 0']
    #allocation4 [shape = 's32[2]{0}', space=sflag, size = 0x8, scoped, tag = 'scoped memory for tpu_custom_call.1']
    %12 = vsyncpa [#allocation4], 0
    %s13 = scalar_lea.sflag [#allocation4], 1
    %14 = vsyncpa %s13, 0
    loop: start=0, step=1, limit=4
    $region2: #{tpu_custom_call.1} parent=1 // loop_pre_header
      _
    $region3: #{tpu_custom_call.1} parent=1 // loop_header
      %s16 = sphi 0, %s20
      %p17 = scmp.ge.s32.totalorder %s16, 4
      %s26 = sphi 0, %s28
      %s29 = sphi 0, %s26
      %s30 = sphi 0, %s29
      %s46 = sphi 0, %s30
      %s50 = sphi 0, %s50
      %s52 = sphi 0, %s50
      %s53 = sphi 0, %s52
      %s67 = sphi 0, %s53
      %s71 = sphi 0, %s71
      %s73 = sphi 0, %s71
      %s74 = sphi 0, %s73
      %s88 = sphi 0, %s74
      %s92 = sphi 0, %s92
      %s94 = sphi 0, %s92
      %s95 = sphi 0, %s94
      %s109 = sphi 0, %s95
      %s113 = sphi 0, %s113
      %s115 = sphi 0, %s113
      %s116 = sphi 0, %s115
      %s130 = sphi 0, %s116
      %s134 = sphi 0, %s134
      %s136 = sphi 0, %s134
      %s137 = sphi 0, %s136
      %s151 = sphi 0, %s137
      %s157 = sphi 0, %s159
      %s160 = sphi 0, %s157
      %s161 = sphi 0, %s160
      %s177 = sphi 0, %s161
    $region4: #{tpu_custom_call.1} parent=1 // loop_header_branch
      %19 = sbr.rel (%p17) target = $region8
    $region5: #{tpu_custom_call.1} parent=1 // loop_body
      %s21 = ssub.s32 %s16, 1
      %s22 = ssub.s32 %s16, 2
      %s23 = sadd.s32 %s16, 1
      %s24 = ssub.s32 %s16, %s23
      %p25 = scmp.eq.s32.totalorder %s24, 0
      %s27 = sadd.s32 %s26, 1
      %s28 = scalar_select %p25, %s26, %s27
      %p31 = pneg %p25
      %p32 = scmp.eq.s32.totalorder %s16, 1
      %p33 = por %p31, %p32
      %p34 = scmp.ne.s32.totalorder %s26, %s29
      %p35 = scmp.eq.s32.totalorder %s16, 0
      %p36 = por %p34, %p35
      %p37 = scmp.ne.s32.totalorder %s26, %s29
      %p38 = scmp.eq.s32.totalorder %s21, 1
      %p39 = por %p37, %p38
      %p40 = scmp.ne.s32.totalorder %s29, %s30
      %p41 = scmp.eq.s32.totalorder %s21, 0
      %p42 = por %p40, %p41
      %p43 = scmp.ne.s32.totalorder %s29, %s30
      %p44 = scmp.eq.s32.totalorder %s22, 1
      %p45 = por %p43, %p44
      %p47 = scmp.ne.s32.totalorder %s30, %s46
      %p48 = scmp.eq.s32.totalorder %s22, 0
      %p49 = por %p47, %p48
      %s51 = sadd.s32 %s50, 1
      %p54 = scmp.eq.s32.totalorder %s16, 1
      %p55 = scmp.ne.s32.totalorder %s50, %s52
      %p56 = scmp.eq.s32.totalorder %s16, 0
      %p57 = por %p55, %p56
      %p58 = scmp.ne.s32.totalorder %s50, %s52
      %p59 = scmp.eq.s32.totalorder %s21, 1
      %p60 = por %p58, %p59
      %p61 = scmp.ne.s32.totalorder %s52, %s53
      %p62 = scmp.eq.s32.totalorder %s21, 0
      %p63 = por %p61, %p62
      %p64 = scmp.ne.s32.totalorder %s52, %s53
      %p65 = scmp.eq.s32.totalorder %s22, 1
      %p66 = por %p64, %p65
      %p68 = scmp.ne.s32.totalorder %s53, %s67
      %p69 = scmp.eq.s32.totalorder %s22, 0
      %p70 = por %p68, %p69
      %s72 = sadd.s32 %s71, 1
      %p75 = scmp.eq.s32.totalorder %s16, 1
      %p76 = scmp.ne.s32.totalorder %s71, %s73
      %p77 = scmp.eq.s32.totalorder %s16, 0
      %p78 = por %p76, %p77
      %p79 = scmp.ne.s32.totalorder %s71, %s73
      %p80 = scmp.eq.s32.totalorder %s21, 1
      %p81 = por %p79, %p80
      %p82 = scmp.ne.s32.totalorder %s73, %s74
      %p83 = scmp.eq.s32.totalorder %s21, 0
      %p84 = por %p82, %p83
      %p85 = scmp.ne.s32.totalorder %s73, %s74
      %p86 = scmp.eq.s32.totalorder %s22, 1
      %p87 = por %p85, %p86
      %p89 = scmp.ne.s32.totalorder %s74, %s88
      %p90 = scmp.eq.s32.totalorder %s22, 0
      %p91 = por %p89, %p90
      %s93 = sadd.s32 %s92, 1
      %p96 = scmp.eq.s32.totalorder %s16, 1
      %p97 = scmp.ne.s32.totalorder %s92, %s94
      %p98 = scmp.eq.s32.totalorder %s16, 0
      %p99 = por %p97, %p98
      %p100 = scmp.ne.s32.totalorder %s92, %s94
      %p101 = scmp.eq.s32.totalorder %s21, 1
      %p102 = por %p100, %p101
      %p103 = scmp.ne.s32.totalorder %s94, %s95
      %p104 = scmp.eq.s32.totalorder %s21, 0
      %p105 = por %p103, %p104
      %p106 = scmp.ne.s32.totalorder %s94, %s95
      %p107 = scmp.eq.s32.totalorder %s22, 1
      %p108 = por %p106, %p107
      %p110 = scmp.ne.s32.totalorder %s95, %s109
      %p111 = scmp.eq.s32.totalorder %s22, 0
      %p112 = por %p110, %p111
      %s114 = sadd.s32 %s113, 1
      %p117 = scmp.eq.s32.totalorder %s16, 1
      %p118 = scmp.ne.s32.totalorder %s113, %s115
      %p119 = scmp.eq.s32.totalorder %s16, 0
      %p120 = por %p118, %p119
      %p121 = scmp.ne.s32.totalorder %s113, %s115
      %p122 = scmp.eq.s32.totalorder %s21, 1
      %p123 = por %p121, %p122
      %p124 = scmp.ne.s32.totalorder %s115, %s116
      %p125 = scmp.eq.s32.totalorder %s21, 0
      %p126 = por %p124, %p125
      %p127 = scmp.ne.s32.totalorder %s115, %s116
      %p128 = scmp.eq.s32.totalorder %s22, 1
      %p129 = por %p127, %p128
      %p131 = scmp.ne.s32.totalorder %s116, %s130
      %p132 = scmp.eq.s32.totalorder %s22, 0
      %p133 = por %p131, %p132
      %s135 = sadd.s32 %s134, 1
      %p138 = scmp.eq.s32.totalorder %s16, 1
      %p139 = scmp.ne.s32.totalorder %s134, %s136
      %p140 = scmp.eq.s32.totalorder %s16, 0
      %p141 = por %p139, %p140
      %p142 = scmp.ne.s32.totalorder %s134, %s136
      %p143 = scmp.eq.s32.totalorder %s21, 1
      %p144 = por %p142, %p143
      %p145 = scmp.ne.s32.totalorder %s136, %s137
      %p146 = scmp.eq.s32.totalorder %s21, 0
      %p147 = por %p145, %p146
      %p148 = scmp.ne.s32.totalorder %s136, %s137
      %p149 = scmp.eq.s32.totalorder %s22, 1
      %p150 = por %p148, %p149
      %p152 = scmp.ne.s32.totalorder %s137, %s151
      %p153 = scmp.eq.s32.totalorder %s22, 0
      %p154 = por %p152, %p153
      %s155 = ssub.s32 %s16, %s23
      %p156 = scmp.eq.s32.totalorder %s155, 0
      %s158 = sadd.s32 %s157, 1
      %s159 = scalar_select %p156, %s157, %s158
      %p162 = pneg %p156
      %p163 = scmp.eq.s32.totalorder %s16, 1
      %p164 = por %p162, %p163
      %p165 = scmp.ne.s32.totalorder %s157, %s160
      %p166 = scmp.eq.s32.totalorder %s16, 0
      %p167 = por %p165, %p166
      %p168 = scmp.ne.s32.totalorder %s157, %s160
      %p169 = scmp.eq.s32.totalorder %s21, 1
      %p170 = por %p168, %p169
      %p171 = scmp.ne.s32.totalorder %s160, %s161
      %p172 = scmp.eq.s32.totalorder %s21, 0
      %p173 = por %p171, %p172
      %p174 = scmp.ne.s32.totalorder %s160, %s161
      %p175 = scmp.eq.s32.totalorder %s22, 1
      %p176 = por %p174, %p175
      %p178 = scmp.ne.s32.totalorder %s161, %s177
      %p179 = scmp.eq.s32.totalorder %s22, 0
      %p180 = por %p178, %p179
      %p181 = scmp.le.s32.totalorder 1, %s16
      %p182 = scmp.lt.s32.totalorder %s16, 3
      %p183 = pnand %p181, %p182
      %p184 = pneg %p183
      // Predicated region
      $region9: #{tpu_custom_call.1} parent=5 // pred_check
        _
      $region10: #{tpu_custom_call.1} parent=5 // pred_check_branch
        %186 = sbr.rel (%p183) target = $region12
      $region11: #{tpu_custom_call.1} parent=5 // pred_region
        %s187 = ssub.s32 %s16, 1
        // Predicated region
        $region13: #{tpu_custom_call.1} parent=11 // pred_check
          %p188 = pneg %p63
        $region14: #{tpu_custom_call.1} parent=11 // pred_check_branch
          %190 = sbr.rel (%p188) target = $region16
        $region15: #{tpu_custom_call.1} parent=11 // pred_region
          _
        $region16: #{tpu_custom_call.1} parent=11 // pred_fallthru
          _
        // Predicated region
        $region17: #{tpu_custom_call.1} parent=11 // pred_check
          %p191 = pneg %p84
        $region18: #{tpu_custom_call.1} parent=11 // pred_check_branch
          %193 = sbr.rel (%p191) target = $region20
        $region19: #{tpu_custom_call.1} parent=11 // pred_region
          _
        $region20: #{tpu_custom_call.1} parent=11 // pred_fallthru
          _
        // Predicated region
        $region21: #{tpu_custom_call.1} parent=11 // pred_check
          %p194 = pneg %p105
        $region22: #{tpu_custom_call.1} parent=11 // pred_check_branch
          %196 = sbr.rel (%p194) target = $region24
        $region23: #{tpu_custom_call.1} parent=11 // pred_region
          _
        $region24: #{tpu_custom_call.1} parent=11 // pred_fallthru
          _
        // Predicated region
        $region25: #{tpu_custom_call.1} parent=11 // pred_check
          %p197 = pneg %p126
        $region26: #{tpu_custom_call.1} parent=11 // pred_check_branch
          %199 = sbr.rel (%p197) target = $region28
        $region27: #{tpu_custom_call.1} parent=11 // pred_region
          _
        $region28: #{tpu_custom_call.1} parent=11 // pred_fallthru
          _
        // Predicated region
        $region29: #{tpu_custom_call.1} parent=11 // pred_check
          %p200 = pneg %p147
        $region30: #{tpu_custom_call.1} parent=11 // pred_check_branch
          %202 = sbr.rel (%p200) target = $region32
        $region31: #{tpu_custom_call.1} parent=11 // pred_region
          _
        $region32: #{tpu_custom_call.1} parent=11 // pred_fallthru
          _
      $region12: #{tpu_custom_call.1} parent=5 // pred_fallthru
        _
      %p203 = scmp.lt.s32.totalorder %s16, 2
      // Predicated region
      $region33: #{tpu_custom_call.1} parent=5 // pred_check
        %p204 = pneg %p203
      $region34: #{tpu_custom_call.1} parent=5 // pred_check_branch
        %206 = sbr.rel (%p204) target = $region36
      $region35: #{tpu_custom_call.1} parent=5 // pred_region
        // Predicated region
        $region37: #{tpu_custom_call.1} parent=35 // pred_check
          %p207 = pneg %p36
        $region38: #{tpu_custom_call.1} parent=35 // pred_check_branch
          %209 = sbr.rel (%p207) target = $region40
        $region39: #{tpu_custom_call.1} parent=35 // pred_region
          %p210 = scmp.lt.s32.totalorder %s16, 1
          %s211 = scalar_select %p210, %s16, 1
          %s212 = smul.addr %s211, 8
          %s213 = scalar_lea.vmem %s0, %s212
        $region40: #{tpu_custom_call.1} parent=35 // pred_fallthru
          _
      $region36: #{tpu_custom_call.1} parent=5 // pred_fallthru
        _
      %p214 = scmp.le.s32.totalorder 1, %s16
      %p215 = scmp.lt.s32.totalorder %s16, 3
      %p216 = pnand %p214, %p215
      %p217 = pneg %p216
      // Predicated region
      $region41: #{tpu_custom_call.1} parent=5 // pred_check
        _
      $region42: #{tpu_custom_call.1} parent=5 // pred_check_branch
        %219 = sbr.rel (%p216) target = $region44
      $region43: #{tpu_custom_call.1} parent=5 // pred_region
        %s220 = ssub.s32 %s16, 1
        %p221 = scmp.lt.s32.totalorder %s21, 1
        %s222 = scalar_select %p221, %s21, 1
        %s223 = smul.addr %s222, 8
        %s224 = scalar_lea.vmem %s0, %s223
        %p225 = pneg %p42
        %p226 = pneg %p39
        %p227 = pneg %p63
        %p228 = pneg %p60
        %p229 = pneg %p84
        %p230 = pneg %p81
        %p231 = pneg %p105
        %p232 = pneg %p102
        %p233 = pneg %p126
        %p234 = pneg %p123
        %p235 = pneg %p147
        %p236 = pneg %p144
        %p237 = pneg %p173
        %p238 = pneg %p170
        %s239 = sand.u32 %s160, 1
        %s240 = scalar_lea.sflag [#allocation4], %s239
        %s241 = sand.u32 %s160, 1
        %s242 = smul.addr %s241, 8
        %s243 = scalar_lea.vmem [#allocation3], %s242
        %p244 = scmp.lt.s32.totalorder %s21, 1
        %s245 = scalar_select %p244, %s21, 1
        %s246 = smul.addr %s245, 8
        %s247 = scalar_lea.vmem %s0, %s246
        %v248 = vld [vmem:[%s247] sm:$0xff]
        %v249 = vld [vmem:[%s1] sm:$0xff]
        %v250 = vld [vmem:[%s1 + $0x8] sm:$0xff]
        %v251 = vld [vmem:[%s1 + $0x10] sm:$0xff]
        %v252 = vld [vmem:[%s1 + $0x18] sm:$0xff]
        %v253 = vld [vmem:[%s2] sm:$0x1]
        %v255 = vperm.slane %v253, 0
        %vm257 = vcmask 261120
        %v259 = vsel %vm257, %v248, 0
        %261 = vmatpush.msra.mxu0 0.0
        %262 = vmatpush.msra.mxu0 0.0
        %263 = vmatpush.msra.mxu0 0.0
        %264 = vmatpush.msra.mxu0 0.0
        %265 = vmatpush.msra.mxu0 0.0
        %266 = vmatpush.msra.mxu0 0.0
        %267 = vmatpush.msra.mxu0 0.0
        %268 = vmatpush.msra.mxu0 0.0
        %269 = vmatpush.msra.mxu0 0.0
        %270 = vmatpush.msra.mxu0 0.0
        %271 = vmatpush.msra.mxu0 0.0
        %272 = vmatpush.msra.mxu0 0.0
        %273 = vmatpush.msra.mxu0 %v252
        %274 = vmatpush.msra.mxu0 %v251
        %275 = vmatpush.msra.mxu0 %v250
        %276 = vmatpush.msra.mxu0 %v249
        %277 = vmatmul.f32.gmra.mxu0 %v259
        %v278 = vpop.f32.mrf.mxu0
        %v279 = vadd.f32 %v255, %v278
        %280 = vdwg.mxu0
        %v281 = vmax.f32 %v279, 0.0
        %v282 = vld [vmem:[%s3] sm:$0xff]
        %v283 = vld [vmem:[%s3 + $0x8] sm:$0xff]
        %v284 = vld [vmem:[%s3 + $0x10] sm:$0xff]
        %v285 = vld [vmem:[%s3 + $0x18] sm:$0xff]
        %v286 = vld [vmem:[%s3 + $0x20] sm:$0xff]
        %v287 = vld [vmem:[%s3 + $0x28] sm:$0xff]
        %v288 = vld [vmem:[%s3 + $0x30] sm:$0xff]
        %v289 = vld [vmem:[%s3 + $0x38] sm:$0xff]
        %v290 = vld [vmem:[%s3 + $0x40] sm:$0xff]
        %v291 = vld [vmem:[%s3 + $0x48] sm:$0xff]
        %v292 = vld [vmem:[%s3 + $0x50] sm:$0xff]
        %v293 = vld [vmem:[%s3 + $0x58] sm:$0xff]
        %v294 = vld [vmem:[%s3 + $0x60] sm:$0xff]
        %v295 = vld [vmem:[%s3 + $0x68] sm:$0xff]
        %v296 = vld [vmem:[%s3 + $0x70] sm:$0xff]
        %v297 = vld [vmem:[%s3 + $0x78] sm:$0xff]
        %v298 = vld [vmem:[%s4] sm:$0x1]
        %v300 = vperm.slane %v298, 0
        %302 = vmatpush.msra.mxu0 %v297
        %303 = vmatpush.msra.mxu0 %v296
        %304 = vmatpush.msra.mxu0 %v295
        %305 = vmatpush.msra.mxu0 %v294
        %306 = vmatpush.msra.mxu0 %v293
        %307 = vmatpush.msra.mxu0 %v292
        %308 = vmatpush.msra.mxu0 %v291
        %309 = vmatpush.msra.mxu0 %v290
        %310 = vmatpush.msra.mxu0 %v289
        %311 = vmatpush.msra.mxu0 %v288
        %312 = vmatpush.msra.mxu0 %v287
        %313 = vmatpush.msra.mxu0 %v286
        %314 = vmatpush.msra.mxu0 %v285
        %315 = vmatpush.msra.mxu0 %v284
        %316 = vmatpush.msra.mxu0 %v283
        %317 = vmatpush.msra.mxu0 %v282
        %318 = vmatmul.f32.gmra.mxu0 %v281
        %v319 = vpop.f32.mrf.mxu0
        %v320 = vadd.f32 %v300, %v319
        %321 = vdwg.mxu0
        %s322 = sld [smem:[#allocation2]]
        %v323 = vstv %s322
        %v324 = vmul.f32 %v320, %v323
        %325 = vst.msk [vmem:[%s243] sm:$0xff] %vm257, %v324
        %s326 = sand.u32 %s160, 1
        %s327 = scalar_lea.sflag [#allocation4], %s326
        %s328 = sand.u32 %s160, 1
        %s329 = smul.addr %s328, 8
        %s330 = scalar_lea.vmem [#allocation3], %s329
        // Predicated region
        $region45: #{tpu_custom_call.1} parent=43 // pred_check
          %p331 = pneg %p170
        $region46: #{tpu_custom_call.1} parent=43 // pred_check_branch
          %333 = sbr.rel (%p331) target = $region48
        $region47: #{tpu_custom_call.1} parent=43 // pred_region
          %335 = vsyncadd %s327, 0
          %s336 = smul.addr %s21, 8
          %s337 = scalar_lea.hbm %s6, %s336
          %s339 = sshll.u32 %s330, 4
          %s340 = int_to_ptr.vmem [resolvable:$true] %s339
          %s341 = sshll.u32 %s337, 4
          %s342 = int_to_ptr.hbm [resolvable:$true] %s341
          %344 = dma.vmem_to_hbm [thread:$0]  %s340, 128, %s342, %s327
        $region48: #{tpu_custom_call.1} parent=43 // pred_fallthru
          _
      $region44: #{tpu_custom_call.1} parent=5 // pred_fallthru
        _
      %p345 = scmp.le.s32.totalorder 2, %s16
      // Predicated region
      $region49: #{tpu_custom_call.1} parent=5 // pred_check
        %p346 = pneg %p345
      $region50: #{tpu_custom_call.1} parent=5 // pred_check_branch
        %348 = sbr.rel (%p346) target = $region52
      $region51: #{tpu_custom_call.1} parent=5 // pred_region
        %s349 = ssub.s32 %s16, 2
        // Predicated region
        $region53: #{tpu_custom_call.1} parent=51 // pred_check
          %p350 = pneg %p176
        $region54: #{tpu_custom_call.1} parent=51 // pred_check_branch
          %352 = sbr.rel (%p350) target = $region56
        $region55: #{tpu_custom_call.1} parent=51 // pred_region
          %s353 = sand.u32 %s161, 1
          %s354 = scalar_lea.sflag [#allocation4], %s353
          %s355 = sand.u32 %s161, 1
          %s356 = smul.addr %s355, 8
          %s357 = scalar_lea.vmem [#allocation3], %s356
          %359 = dma.done %s354, 128
        $region56: #{tpu_custom_call.1} parent=51 // pred_fallthru
          _
      $region52: #{tpu_custom_call.1} parent=5 // pred_fallthru
        _
    $region6: #{tpu_custom_call.1} parent=1 // loop_footer
      %s20 = sadd.s32 1, %s16
    $region7: #{tpu_custom_call.1} parent=1 // loop_footer_branch
      %15 = sbr.rel target = $region3
    $region8: #{tpu_custom_call.1} parent=1 // loop_exit
      _
    %360 = vsyncpa [#allocation4], 1
    %s361 = scalar_lea.sflag [#allocation4], 1
    %362 = vsyncpa %s361, 1

// kernel: tpu_custom_call.1
$region0: #{tpu_custom_call.1}
  #allocation0 [shape = 'u32[]', space=smem, size = 0x4, offset = 0x4, fixed_abs, tag = 'smem constant byte address 0x4 - core index']
  #allocation1 [shape = 'u32[72,128]{1,0:T(1,128)}', space=vmem, size = 0x9000, scoped, tag = 'internal scratch']
  #allocation2 [shape = 'f32[1]{0:T(128)S(6)}', space=smem, size = 0x200, scoped, tag = 'scoped memory for tpu_custom_call.1']
  %s0 = inlined_call_operand.vmem [shape: f32[16,32], index: 0, kind: input, shape index: {}]
  %s1 = inlined_call_operand.vmem [shape: f32[32,128], index: 1, kind: input, shape index: {}]
  %s2 = inlined_call_operand.vmem [shape: f32[1,128], index: 2, kind: input, shape index: {}]
  %s3 = inlined_call_operand.vmem [shape: f32[128,32], index: 3, kind: input, shape index: {}]
  %s4 = inlined_call_operand.vmem [shape: f32[1,32], index: 4, kind: input, shape index: {}]
  %s5 = inlined_call_operand.<no memory space> [shape: f32[1], index: 5, kind: input, shape index: {}]
  %s6 = inlined_call_operand.hbm [shape: f32[16,32], index: 6, kind: output, shape index: {}]
  %s7 = sld [smem:[#allocation0]]
  $region57: #{tpu_custom_call.1} parent=0
    _
  %s9 = ssub.s32 1, %s7
  %s10 = scalar_select 0, %s9, %s7
  %11 = sst [smem:[#allocation2]] %s5
  $region1: #{tpu_custom_call.1} parent=0
    #allocation3 [shape = 'u8[8192]{0}', space=vmem, size = 0x2000, scoped, tag = 'output window, operand 0']
    #allocation4 [shape = 's32[2]{0}', space=sflag, size = 0x8, scoped, tag = 'scoped memory for tpu_custom_call.1']
    %12 = vsyncpa [#allocation4], 0
    %s13 = scalar_lea.sflag [#allocation4], 1
    %14 = vsyncpa %s13, 0
    loop: start=0, step=1, limit=4
    $region2: #{tpu_custom_call.1} parent=1 // loop_pre_header
      _
    $region3: #{tpu_custom_call.1} parent=1 // loop_header
      %s16 = sphi 0, %s20
      %p17 = scmp.ge.s32.totalorder %s16, 4
      %s26 = sphi 0, %s28
      %s29 = sphi 0, %s26
      %s30 = sphi 0, %s29
      %s46 = sphi 0, %s30
      %s50 = sphi 0, %s50
      %s52 = sphi 0, %s50
      %s53 = sphi 0, %s52
      %s67 = sphi 0, %s53
      %s71 = sphi 0, %s71
      %s73 = sphi 0, %s71
      %s74 = sphi 0, %s73
      %s88 = sphi 0, %s74
      %s92 = sphi 0, %s92
      %s94 = sphi 0, %s92
      %s95 = sphi 0, %s94
      %s109 = sphi 0, %s95
      %s113 = sphi 0, %s113
      %s115 = sphi 0, %s113
      %s116 = sphi 0, %s115
      %s130 = sphi 0, %s116
      %s134 = sphi 0, %s134
      %s136 = sphi 0, %s134
      %s137 = sphi 0, %s136
      %s151 = sphi 0, %s137
      %s157 = sphi 0, %s159
      %s160 = sphi 0, %s157
      %s161 = sphi 0, %s160
      %s177 = sphi 0, %s161
    $region4: #{tpu_custom_call.1} parent=1 // loop_header_branch
      %19 = sbr.rel (%p17) target = $region8
    $region5: #{tpu_custom_call.1} parent=1 // loop_body
      %s21 = ssub.s32 %s16, 1
      %s22 = ssub.s32 %s16, 2
      %s23 = sadd.s32 %s16, 1
      %s24 = ssub.s32 %s16, %s23
      %p25 = scmp.eq.s32.totalorder %s24, 0
      %s27 = sadd.s32 %s26, 1
      %s28 = scalar_select %p25, %s26, %s27
      %p31 = pneg %p25
      %p32 = scmp.eq.s32.totalorder %s16, 1
      %p33 = por %p31, %p32
      %p34 = scmp.ne.s32.totalorder %s26, %s29
      %p35 = scmp.eq.s32.totalorder %s16, 0
      %p36 = por %p34, %p35
      %p37 = scmp.ne.s32.totalorder %s26, %s29
      %p38 = scmp.eq.s32.totalorder %s21, 1
      %p39 = por %p37, %p38
      %p40 = scmp.ne.s32.totalorder %s29, %s30
      %p41 = scmp.eq.s32.totalorder %s21, 0
      %p42 = por %p40, %p41
      %p43 = scmp.ne.s32.totalorder %s29, %s30
      %p44 = scmp.eq.s32.totalorder %s22, 1
      %p45 = por %p43, %p44
      %p47 = scmp.ne.s32.totalorder %s30, %s46
      %p48 = scmp.eq.s32.totalorder %s22, 0
      %p49 = por %p47, %p48
      %s51 = sadd.s32 %s50, 1
      %p54 = scmp.eq.s32.totalorder %s16, 1
      %p55 = scmp.ne.s32.totalorder %s50, %s52
      %p56 = scmp.eq.s32.totalorder %s16, 0
      %p57 = por %p55, %p56
      %p58 = scmp.ne.s32.totalorder %s50, %s52
      %p59 = scmp.eq.s32.totalorder %s21, 1
      %p60 = por %p58, %p59
      %p61 = scmp.ne.s32.totalorder %s52, %s53
      %p62 = scmp.eq.s32.totalorder %s21, 0
      %p63 = por %p61, %p62
      %p64 = scmp.ne.s32.totalorder %s52, %s53
      %p65 = scmp.eq.s32.totalorder %s22, 1
      %p66 = por %p64, %p65
      %p68 = scmp.ne.s32.totalorder %s53, %s67
      %p69 = scmp.eq.s32.totalorder %s22, 0
      %p70 = por %p68, %p69
      %s72 = sadd.s32 %s71, 1
      %p75 = scmp.eq.s32.totalorder %s16, 1
      %p76 = scmp.ne.s32.totalorder %s71, %s73
      %p77 = scmp.eq.s32.totalorder %s16, 0
      %p78 = por %p76, %p77
      %p79 = scmp.ne.s32.totalorder %s71, %s73
      %p80 = scmp.eq.s32.totalorder %s21, 1
      %p81 = por %p79, %p80
      %p82 = scmp.ne.s32.totalorder %s73, %s74
      %p83 = scmp.eq.s32.totalorder %s21, 0
      %p84 = por %p82, %p83
      %p85 = scmp.ne.s32.totalorder %s73, %s74
      %p86 = scmp.eq.s32.totalorder %s22, 1
      %p87 = por %p85, %p86
      %p89 = scmp.ne.s32.totalorder %s74, %s88
      %p90 = scmp.eq.s32.totalorder %s22, 0
      %p91 = por %p89, %p90
      %s93 = sadd.s32 %s92, 1
      %p96 = scmp.eq.s32.totalorder %s16, 1
      %p97 = scmp.ne.s32.totalorder %s92, %s94
      %p98 = scmp.eq.s32.totalorder %s16, 0
      %p99 = por %p97, %p98
      %p100 = scmp.ne.s32.totalorder %s92, %s94
      %p101 = scmp.eq.s32.totalorder %s21, 1
      %p102 = por %p100, %p101
      %p103 = scmp.ne.s32.totalorder %s94, %s95
      %p104 = scmp.eq.s32.totalorder %s21, 0
      %p105 = por %p103, %p104
      %p106 = scmp.ne.s32.totalorder %s94, %s95
      %p107 = scmp.eq.s32.totalorder %s22, 1
      %p108 = por %p106, %p107
      %p110 = scmp.ne.s32.totalorder %s95, %s109
      %p111 = scmp.eq.s32.totalorder %s22, 0
      %p112 = por %p110, %p111
      %s114 = sadd.s32 %s113, 1
      %p117 = scmp.eq.s32.totalorder %s16, 1
      %p118 = scmp.ne.s32.totalorder %s113, %s115
      %p119 = scmp.eq.s32.totalorder %s16, 0
      %p120 = por %p118, %p119
      %p121 = scmp.ne.s32.totalorder %s113, %s115
      %p122 = scmp.eq.s32.totalorder %s21, 1
      %p123 = por %p121, %p122
      %p124 = scmp.ne.s32.totalorder %s115, %s116
      %p125 = scmp.eq.s32.totalorder %s21, 0
      %p126 = por %p124, %p125
      %p127 = scmp.ne.s32.totalorder %s115, %s116
      %p128 = scmp.eq.s32.totalorder %s22, 1
      %p129 = por %p127, %p128
      %p131 = scmp.ne.s32.totalorder %s116, %s130
      %p132 = scmp.eq.s32.totalorder %s22, 0
      %p133 = por %p131, %p132
      %s135 = sadd.s32 %s134, 1
      %p138 = scmp.eq.s32.totalorder %s16, 1
      %p139 = scmp.ne.s32.totalorder %s134, %s136
      %p140 = scmp.eq.s32.totalorder %s16, 0
      %p141 = por %p139, %p140
      %p142 = scmp.ne.s32.totalorder %s134, %s136
      %p143 = scmp.eq.s32.totalorder %s21, 1
      %p144 = por %p142, %p143
      %p145 = scmp.ne.s32.totalorder %s136, %s137
      %p146 = scmp.eq.s32.totalorder %s21, 0
      %p147 = por %p145, %p146
      %p148 = scmp.ne.s32.totalorder %s136, %s137
      %p149 = scmp.eq.s32.totalorder %s22, 1
      %p150 = por %p148, %p149
      %p152 = scmp.ne.s32.totalorder %s137, %s151
      %p153 = scmp.eq.s32.totalorder %s22, 0
      %p154 = por %p152, %p153
      %s155 = ssub.s32 %s16, %s23
      %p156 = scmp.eq.s32.totalorder %s155, 0
      %s158 = sadd.s32 %s157, 1
      %s159 = scalar_select %p156, %s157, %s158
      %p162 = pneg %p156
      %p163 = scmp.eq.s32.totalorder %s16, 1
      %p164 = por %p162, %p163
      %p165 = scmp.ne.s32.totalorder %s157, %s160
      %p166 = scmp.eq.s32.totalorder %s16, 0
      %p167 = por %p165, %p166
      %p168 = scmp.ne.s32.totalorder %s157, %s160
      %p169 = scmp.eq.s32.totalorder %s21, 1
      %p170 = por %p168, %p169
      %p171 = scmp.ne.s32.totalorder %s160, %s161
      %p172 = scmp.eq.s32.totalorder %s21, 0
      %p173 = por %p171, %p172
      %p174 = scmp.ne.s32.totalorder %s160, %s161
      %p175 = scmp.eq.s32.totalorder %s22, 1
      %p176 = por %p174, %p175
      %p178 = scmp.ne.s32.totalorder %s161, %s177
      %p179 = scmp.eq.s32.totalorder %s22, 0
      %p180 = por %p178, %p179
      %p181 = scmp.le.s32.totalorder 1, %s16
      %p182 = scmp.lt.s32.totalorder %s16, 3
      %p183 = pnand %p181, %p182
      %p184 = pneg %p183
      // Predicated region
      $region9: #{tpu_custom_call.1} parent=5 // pred_check
        _
      $region10: #{tpu_custom_call.1} parent=5 // pred_check_branch
        %186 = sbr.rel (%p183) target = $region12
      $region11: #{tpu_custom_call.1} parent=5 // pred_region
        %s187 = ssub.s32 %s16, 1
        // Predicated region
        $region13: #{tpu_custom_call.1} parent=11 // pred_check
          %p188 = pneg %p63
        $region14: #{tpu_custom_call.1} parent=11 // pred_check_branch
          %190 = sbr.rel (%p188) target = $region16
        $region15: #{tpu_custom_call.1} parent=11 // pred_region
          _
        $region16: #{tpu_custom_call.1} parent=11 // pred_fallthru
          _
        // Predicated region
        $region17: #{tpu_custom_call.1} parent=11 // pred_check
          %p191 = pneg %p84
        $region18: #{tpu_custom_call.1} parent=11 // pred_check_branch
          %193 = sbr.rel (%p191) target = $region20
        $region19: #{tpu_custom_call.1} parent=11 // pred_region
          _
        $region20: #{tpu_custom_call.1} parent=11 // pred_fallthru
          _
        // Predicated region
        $region21: #{tpu_custom_call.1} parent=11 // pred_check
          %p194 = pneg %p105
        $region22: #{tpu_custom_call.1} parent=11 // pred_check_branch
          %196 = sbr.rel (%p194) target = $region24
        $region23: #{tpu_custom_call.1} parent=11 // pred_region
          _
        $region24: #{tpu_custom_call.1} parent=11 // pred_fallthru
          _
        // Predicated region
        $region25: #{tpu_custom_call.1} parent=11 // pred_check
          %p197 = pneg %p126
        $region26: #{tpu_custom_call.1} parent=11 // pred_check_branch
          %199 = sbr.rel (%p197) target = $region28
        $region27: #{tpu_custom_call.1} parent=11 // pred_region
          _
        $region28: #{tpu_custom_call.1} parent=11 // pred_fallthru
          _
        // Predicated region
        $region29: #{tpu_custom_call.1} parent=11 // pred_check
          %p200 = pneg %p147
        $region30: #{tpu_custom_call.1} parent=11 // pred_check_branch
          %202 = sbr.rel (%p200) target = $region32
        $region31: #{tpu_custom_call.1} parent=11 // pred_region
          _
        $region32: #{tpu_custom_call.1} parent=11 // pred_fallthru
          _
      $region12: #{tpu_custom_call.1} parent=5 // pred_fallthru
        _
      %p203 = scmp.lt.s32.totalorder %s16, 2
      // Predicated region
      $region33: #{tpu_custom_call.1} parent=5 // pred_check
        %p204 = pneg %p203
      $region34: #{tpu_custom_call.1} parent=5 // pred_check_branch
        %206 = sbr.rel (%p204) target = $region36
      $region35: #{tpu_custom_call.1} parent=5 // pred_region
        // Predicated region
        $region37: #{tpu_custom_call.1} parent=35 // pred_check
          %p207 = pneg %p36
        $region38: #{tpu_custom_call.1} parent=35 // pred_check_branch
          %209 = sbr.rel (%p207) target = $region40
        $region39: #{tpu_custom_call.1} parent=35 // pred_region
          %p210 = scmp.lt.s32.totalorder %s16, 1
          %s211 = scalar_select %p210, %s16, 1
          %s212 = smul.addr %s211, 8
          %s213 = scalar_lea.vmem %s0, %s212
        $region40: #{tpu_custom_call.1} parent=35 // pred_fallthru
          _
      $region36: #{tpu_custom_call.1} parent=5 // pred_fallthru
        _
      %p214 = scmp.le.s32.totalorder 1, %s16
      %p215 = scmp.lt.s32.totalorder %s16, 3
      %p216 = pnand %p214, %p215
      %p217 = pneg %p216
      // Predicated region
      $region41: #{tpu_custom_call.1} parent=5 // pred_check
        _
      $region42: #{tpu_custom_call.1} parent=5 // pred_check_branch
        %219 = sbr.rel (%p216) target = $region44
      $region43: #{tpu_custom_call.1} parent=5 // pred_region
        %s220 = ssub.s32 %s16, 1
        %p221 = scmp.lt.s32.totalorder %s21, 1
        %s222 = scalar_select %p221, %s21, 1
        %s223 = smul.addr %s222, 8
        %s224 = scalar_lea.vmem %s0, %s223
        %p225 = pneg %p42
        %p226 = pneg %p39
        %p227 = pneg %p63
        %p228 = pneg %p60
        %p229 = pneg %p84
        %p230 = pneg %p81
        %p231 = pneg %p105
        %p232 = pneg %p102
        %p233 = pneg %p126
        %p234 = pneg %p123
        %p235 = pneg %p147
        %p236 = pneg %p144
        %p237 = pneg %p173
        %p238 = pneg %p170
        %s239 = sand.u32 %s160, 1
        %s240 = scalar_lea.sflag [#allocation4], %s239
        %s241 = sand.u32 %s160, 1
        %s242 = smul.addr %s241, 8
        %s243 = scalar_lea.vmem [#allocation3], %s242
        %p244 = scmp.lt.s32.totalorder %s21, 1
        %s245 = scalar_select %p244, %s21, 1
        %s246 = smul.addr %s245, 8
        %s247 = scalar_lea.vmem %s0, %s246
        %v248 = vld [vmem:[%s247] sm:$0xff]
        %v249 = vld [vmem:[%s1] sm:$0xff]
        %v250 = vld [vmem:[%s1 + $0x8] sm:$0xff]
        %v251 = vld [vmem:[%s1 + $0x10] sm:$0xff]
        %v252 = vld [vmem:[%s1 + $0x18] sm:$0xff]
        %v253 = vld [vmem:[%s2] sm:$0x1]
        %v255 = vperm.slane %v253, 0
        %vm257 = vcmask 261120
        %v259 = vsel %vm257, %v248, 0
        %261 = vmatpush.msra.mxu0 0.0
        %262 = vmatpush.msra.mxu0 0.0
        %263 = vmatpush.msra.mxu0 0.0
        %264 = vmatpush.msra.mxu0 0.0
        %265 = vmatpush.msra.mxu0 0.0
        %266 = vmatpush.msra.mxu0 0.0
        %267 = vmatpush.msra.mxu0 0.0
        %268 = vmatpush.msra.mxu0 0.0
        %269 = vmatpush.msra.mxu0 0.0
        %270 = vmatpush.msra.mxu0 0.0
        %271 = vmatpush.msra.mxu0 0.0
        %272 = vmatpush.msra.mxu0 0.0
        %273 = vmatpush.msra.mxu0 %v252
        %274 = vmatpush.msra.mxu0 %v251
        %275 = vmatpush.msra.mxu0 %v250
        %276 = vmatpush.msra.mxu0 %v249
        %277 = vmatmul.f32.gmra.mxu0 %v259
        %v278 = vpop.f32.mrf.mxu0
        %v279 = vadd.f32 %v255, %v278
        %280 = vdwg.mxu0
        %v281 = vmax.f32 %v279, 0.0
        %v282 = vld [vmem:[%s3] sm:$0xff]
        %v283 = vld [vmem:[%s3 + $0x8] sm:$0xff]
        %v284 = vld [vmem:[%s3 + $0x10] sm:$0xff]
        %v285 = vld [vmem:[%s3 + $0x18] sm:$0xff]
        %v286 = vld [vmem:[%s3 + $0x20] sm:$0xff]
        %v287 = vld [vmem:[%s3 + $0x28] sm:$0xff]
        %v288 = vld [vmem:[%s3 + $0x30] sm:$0xff]
        %v289 = vld [vmem:[%s3 + $0x38] sm:$0xff]
        %v290 = vld [vmem:[%s3 + $0x40] sm:$0xff]
        %v291 = vld [vmem:[%s3 + $0x48] sm:$0xff]
        %v292 = vld [vmem:[%s3 + $0x50] sm:$0xff]
        %v293 = vld [vmem:[%s3 + $0x58] sm:$0xff]
        %v294 = vld [vmem:[%s3 + $0x60] sm:$0xff]
        %v295 = vld [vmem:[%s3 + $0x68] sm:$0xff]
        %v296 = vld [vmem:[%s3 + $0x70] sm:$0xff]
        %v297 = vld [vmem:[%s3 + $0x78] sm:$0xff]
        %v298 = vld [vmem:[%s4] sm:$0x1]
        %v300 = vperm.slane %v298, 0
        %302 = vmatpush.msra.mxu0 %v297
        %303 = vmatpush.msra.mxu0 %v296
        %304 = vmatpush.msra.mxu0 %v295
        %305 = vmatpush.msra.mxu0 %v294
        %306 = vmatpush.msra.mxu0 %v293
        %307 = vmatpush.msra.mxu0 %v292
        %308 = vmatpush.msra.mxu0 %v291
        %309 = vmatpush.msra.mxu0 %v290
        %310 = vmatpush.msra.mxu0 %v289
        %311 = vmatpush.msra.mxu0 %v288
        %312 = vmatpush.msra.mxu0 %v287
        %313 = vmatpush.msra.mxu0 %v286
        %314 = vmatpush.msra.mxu0 %v285
        %315 = vmatpush.msra.mxu0 %v284
        %316 = vmatpush.msra.mxu0 %v283
        %317 = vmatpush.msra.mxu0 %v282
        %318 = vmatmul.f32.gmra.mxu0 %v281
        %v319 = vpop.f32.mrf.mxu0
        %v320 = vadd.f32 %v300, %v319
        %321 = vdwg.mxu0
        %s322 = sld [smem:[#allocation2]]
        %v323 = vstv %s322
        %v324 = vmul.f32 %v320, %v323
        %325 = vst.msk [vmem:[%s243] sm:$0xff] %vm257, %v324
        %s326 = sand.u32 %s160, 1
        %s327 = scalar_lea.sflag [#allocation4], %s326
        %s328 = sand.u32 %s160, 1
        %s329 = smul.addr %s328, 8
        %s330 = scalar_lea.vmem [#allocation3], %s329
        // Predicated region
        $region45: #{tpu_custom_call.1} parent=43 // pred_check
          %p331 = pneg %p170
        $region46: #{tpu_custom_call.1} parent=43 // pred_check_branch
          %333 = sbr.rel (%p331) target = $region48
        $region47: #{tpu_custom_call.1} parent=43 // pred_region
          %335 = vsyncadd %s327, 0
          %s336 = smul.addr %s21, 8
          %s337 = scalar_lea.hbm %s6, %s336
          %s339 = sshll.u32 %s330, 4
          %s340 = int_to_ptr.vmem [resolvable:$true] %s339
          %s341 = sshll.u32 %s337, 4
          %s342 = int_to_ptr.hbm [resolvable:$true] %s341
          %344 = dma.vmem_to_hbm [thread:$0]  %s340, 128, %s342, %s327
        $region48: #{tpu_custom_call.1} parent=43 // pred_fallthru
          _
      $region44: #{tpu_custom_call.1} parent=5 // pred_fallthru
        _
      %p345 = scmp.le.s32.totalorder 2, %s16
      // Predicated region
      $region49: #{tpu_custom_call.1} parent=5 // pred_check
        %p346 = pneg %p345
      $region50: #{tpu_custom_call.1} parent=5 // pred_check_branch
        %348 = sbr.rel (%p346) target = $region52
      $region51: #{tpu_custom_call.1} parent=5 // pred_region
        %s349 = ssub.s32 %s16, 2
        // Predicated region
        $region53: #{tpu_custom_call.1} parent=51 // pred_check
          %p350 = pneg %p176
        $region54: #{tpu_custom_call.1} parent=51 // pred_check_branch
          %352 = sbr.rel (%p350) target = $region56
        $region55: #{tpu_custom_call.1} parent=51 // pred_region
          %s353 = sand.u32 %s161, 1
          %s354 = scalar_lea.sflag [#allocation4], %s353
          %s355 = sand.u32 %s161, 1
          %s356 = smul.addr %s355, 8
          %s357 = scalar_lea.vmem [#allocation3], %s356
          %359 = dma.done %s354, 128
        $region56: #{tpu_custom_call.1} parent=51 // pred_fallthru
          _
      $region52: #{tpu_custom_call.1} parent=5 // pred_fallthru
        _
    $region6: #{tpu_custom_call.1} parent=1 // loop_footer
      %s20 = sadd.s32 1, %s16
    $region7: #{tpu_custom_call.1} parent=1 // loop_footer_branch
      %15 = sbr.rel target = $region3
    $region8: #{tpu_custom_call.1} parent=1 // loop_exit
      _
    %360 = vsyncpa [#allocation4], 1
    %s361 = scalar_lea.sflag [#allocation4], 1
    %362 = vsyncpa %s361, 1

</llo_original>
